<compile_context>
chip_gen: v7x
topology: tpu7x:2x2x1
jax: 0.10.0
libtpu: 0.0.40
codegen_flags: <defaults>
</compile_context>

<pallas_src>
import functools

import jax
import jax.numpy as jnp
from jax import lax
from jax.experimental import pallas as pl
from jax.experimental.pallas import tpu as pltpu

EOS_TOKEN = 3
PAD_TOKEN = 0
SOS_TOKEN = 2
UNK_TOKEN = 1
eng_vocab = {'<PAD>': PAD_TOKEN, '<UNK>': UNK_TOKEN, '<SOS>': SOS_TOKEN, '<EOS>': EOS_TOKEN}
ENG_VOCAB_SIZE = len(eng_vocab)   # 4

EMBED_DIM = 256
HIDDEN = 32                       # hidden_size
BATCH = 2
SEQ = 8


# --------------------------------------------------------------------------
# Pallas kernel: fused bidirectional LSTM recurrence, single invocation.
#
#   gx_ref : (T*B, 8H)  pre-blended, bias-folded input gates
#                       col = gate*2H + dir*H + j, gate order (i, f, o, g);
#                       row k*B+b: fwd lanes use token[b,k], bwd lanes token[b,T-1-k]
#   wh_ref : (2H, 8H)   block-diagonal recurrent weights (same column layout)
#   out_ref: (T//2*B + B, 4H) lane-dense output slab:
#            rows 0..T//2*B-1 : [out(t, b) | out(t+T//2, b)]  (r = t*B + b)
#            rows  ..  + B-1  : [h_final(b) | c_final(b)]
# --------------------------------------------------------------------------
def _bilstm_fused_kernel(gx_ref, wh_ref, out_ref, *, T, B, H):
    H2 = 2 * H                                   # per-gate width (fwd|bwd)

    h_cat = jnp.zeros((B, H2), jnp.float32)      # [h_fwd | h_bwd]
    c_cat = jnp.zeros((B, H2), jnp.float32)
    hs = []

    # Statically unrolled serial recurrence; h/c stay in vregs.
    for k in range(T):
        gx_k = gx_ref[pl.ds(k * B, B), :]                              # (B, 8H)
        gates = gx_k + jnp.dot(h_cat, wh_ref[...],
                               preferred_element_type=jnp.float32)     # (B, 8H)
        # gate order (i, f, o, g): sigmoid on contiguous 6H, tanh only on 2H
        sig = jax.nn.sigmoid(gates[:, :3 * H2])
        i_cat = sig[:, 0 * H2:1 * H2]
        f_cat = sig[:, 1 * H2:2 * H2]
        o_cat = sig[:, 2 * H2:3 * H2]
        g_cat = jnp.tanh(gates[:, 3 * H2:4 * H2])
        c_cat = f_cat * c_cat + i_cat * g_cat
        h_cat = o_cat * jnp.tanh(c_cat)
        hs.append(h_cat)

    # Epilogue (off the recurrent chain): blend fwd/bwd per output time step.
    # out[t] = [h_fwd(t) | h_bwd(t)]; h_bwd(t) was produced at iteration T-1-t.
    fwd_mask = lax.broadcasted_iota(jnp.int32, (B, H2), 1) < H
    blend = [jnp.where(fwd_mask, hs[t], hs[T - 1 - t]) for t in range(T)]

    half = T // 2
    lo = jnp.concatenate(blend[:half], axis=0)               # (half*B, 2H) times 0..half-1
    hi = jnp.concatenate(blend[half:], axis=0)               # (half*B, 2H) times half..T-1
    main = jnp.concatenate([lo, hi], axis=-1)                # (half*B, 4H) lane-dense
    finals = jnp.concatenate([hs[T - 1], c_cat], axis=-1)    # (B, 4H) = [h_fin | c_fin]
    out_ref[...] = jnp.concatenate([main, finals], axis=0)   # single lane-dense store


def bilstm_pallas(gx, wh, *, T, B, H):
    """gx: (T*B, 8H) pre-blended input gates; wh: (2H, 8H) block-diag recurrent."""
    n_rows = (T // 2) * B + B
    kernel = functools.partial(_bilstm_fused_kernel, T=T, B=B, H=H)
    vmem = lambda: pl.BlockSpec(memory_space=pltpu.MemorySpace.VMEM)
    return pl.pallas_call(
        kernel,
        out_shape=jax.ShapeDtypeStruct((n_rows, 4 * H), jnp.float32),
        in_specs=[vmem(), vmem()],
        out_specs=vmem(),
    )(gx, wh)


# --------------------------------------------------------------------------
# Parameter init (deterministic, matches PyTorch shapes)
# --------------------------------------------------------------------------
def init_params(key, vocab_size, hidden_size):
    ks = jax.random.split(key, 10)
    H, E = hidden_size, EMBED_DIM
    s = 1.0 / jnp.sqrt(H)
    emb = jax.random.normal(ks[0], (vocab_size, E), jnp.float32)
    # per direction: W_ih (4H, E), W_hh (4H, H), b_ih (4H,), b_hh (4H,)  (PyTorch i,f,g,o)
    wih = jax.random.uniform(ks[1], (2, 4 * H, E), jnp.float32, -s, s)
    whh = jax.random.uniform(ks[2], (2, 4 * H, H), jnp.float32, -s, s)
    bih = jax.random.uniform(ks[3], (2, 4 * H), jnp.float32, -s, s)
    bhh = jax.random.uniform(ks[4], (2, 4 * H), jnp.float32, -s, s)
    return dict(embedding=emb, wih=wih, whh=whh, bih=bih, bhh=bhh)


# --------------------------------------------------------------------------
# One-time weight packing (hoisted OUT of the jitted per-call forward)
# --------------------------------------------------------------------------
def pack_params(params):
    H, E = HIDDEN, EMBED_DIM
    perm = jnp.array([0, 1, 3, 2])                       # PyTorch (i,f,g,o) -> (i,f,o,g)
    wih = params["wih"].reshape(2, 4, H, E)[:, perm]     # (dir, gate, h_out, E)
    whh = params["whh"].reshape(2, 4, H, H)[:, perm]     # (dir, gate, h_out, h_in)
    b = (params["bih"] + params["bhh"]).reshape(2, 4, H)[:, perm]

    # Input weights in kernel layout: col = gate*2H + dir*H + j
    wx = jnp.transpose(wih, (3, 1, 0, 2)).reshape(E, 8 * H)
    bias = jnp.transpose(b, (1, 0, 2)).reshape(1, 8 * H)

    # Fold embedding (vocab=4 << E=256) through the input projection once:
    G = params["embedding"] @ wx + bias                  # (V, 8H)
    col = jnp.arange(8 * H)
    fwd_mask = (col % (2 * H)) < H
    G_fwd = jnp.where(fwd_mask[None, :], G, 0.0)         # fwd lanes only
    G_bwd = jnp.where(fwd_mask[None, :], 0.0, G)         # bwd lanes only

    # Recurrent weights, block-diagonal per direction, same column layout.
    whh_t = jnp.transpose(whh, (0, 3, 1, 2))             # (dir, h_in, gate, h_out)
    blk = jnp.zeros((2, H, 4, 2, H), jnp.float32)
    blk = blk.at[0, :, :, 0, :].set(whh_t[0])
    blk = blk.at[1, :, :, 1, :].set(whh_t[1])
    wh = blk.reshape(2 * H, 8 * H)
    return dict(G_fwd=G_fwd, G_bwd=G_bwd, wh=wh)


# --------------------------------------------------------------------------
# Full forward (PyTorch-equivalent semantics)
# --------------------------------------------------------------------------
@jax.jit
def encoder_rnn_forward(tokens, packed):
    # tokens: (B, T) int32
    B, T = tokens.shape
    H = HIDDEN

    # Tiny vocab-4 table gathers (glue): fwd lanes use token[t], bwd lanes token[T-1-t].
    tok_f = tokens.T.reshape(T * B)                       # time-major forward
    tok_b = tokens[:, ::-1].T.reshape(T * B)              # time-major reversed
    gx = packed["G_fwd"][tok_f] + packed["G_bwd"][tok_b]  # (T*B, 8H), bias folded

    out_buf = bilstm_pallas(gx, packed["wh"], T=T, B=B, H=H)

    half = T // 2
    main = out_buf[:half * B]                             # (half*B, 4H)
    out_tb = jnp.concatenate([main[:, :2 * H], main[:, 2 * H:]], axis=0)
    out_tb = out_tb.reshape(T, B, 2 * H)
    output = jnp.transpose(out_tb, (1, 0, 2))             # (B, T, 2H) batch_first
    finals = out_buf[half * B:half * B + B]               # (B, 4H)
    hidden = finals[:, :2 * H][None]                      # (1, B, 2H) = cat(h_fwd, h_bwd)
    cell = finals[:, 2 * H:][None]                        # (1, B, 2H)
    return output, hidden, cell


# --------------------------------------------------------------------------
# Pure-JAX reference (for correctness check)
# --------------------------------------------------------------------------
def encoder_rnn_reference(tokens, params):
    emb = params["embedding"][tokens]                 # (B, T, E)
    x = jnp.transpose(emb, (1, 0, 2))                 # (T, B, E)
    T, B, E = x.shape
    H = HIDDEN
    wih_t = jnp.transpose(params["wih"], (0, 2, 1))
    whh_t = jnp.transpose(params["whh"], (0, 2, 1))
    bias = (params["bih"] + params["bhh"])[:, None, :]

    def run_dir(d, xs):
        def step(carry, x_t):
            h, c = carry
            gates = x_t @ wih_t[d] + h @ whh_t[d] + bias[d]
            i = jax.nn.sigmoid(gates[:, :H])
            f = jax.nn.sigmoid(gates[:, H:2 * H])
            g = jnp.tanh(gates[:, 2 * H:3 * H])
            o = jax.nn.sigmoid(gates[:, 3 * H:])
            c = f * c + i * g
            h = o * jnp.tanh(c)
            return (h, c), h
        (hT, cT), hs = lax.scan(step, (jnp.zeros((B, H)), jnp.zeros((B, H))), xs)
        return hs, hT, cT

    hs_f, hf, cf = run_dir(0, x)
    hs_b, hb, cb = run_dir(1, x[::-1])
    hs_b = hs_b[::-1]
    output = jnp.transpose(jnp.concatenate([hs_f, hs_b], axis=-1), (1, 0, 2))
    hidden = jnp.concatenate([hf, hb], axis=1)[None]
    cell = jnp.concatenate([cf, cb], axis=1)[None]
    return output, hidden, cell


if __name__ == "__main__":
    key = jax.random.PRNGKey(0)
    k_p, k_x = jax.random.split(key)
    params = init_params(k_p, ENG_VOCAB_SIZE, HIDDEN)
    tokens = jax.random.randint(k_x, (BATCH, SEQ), 0, ENG_VOCAB_SIZE, dtype=jnp.int32)

    packed = jax.tree_util.tree_map(jnp.asarray, pack_params(params))  # pack ONCE

    out, hid, cell = encoder_rnn_forward(tokens, packed)
    jax.block_until_ready((out, hid, cell))

    ref_out, ref_hid, ref_cell = encoder_rnn_reference(tokens, params)
    assert out.shape == (BATCH, SEQ, 2 * HIDDEN)
    assert hid.shape == (1, BATCH, 2 * HIDDEN)
    assert cell.shape == (1, BATCH, 2 * HIDDEN)
    assert jnp.allclose(out, ref_out, rtol=1e-4, atol=1e-4)
    assert jnp.allclose(hid, ref_hid, rtol=1e-4, atol=1e-4)
    assert jnp.allclose(cell, ref_cell, rtol=1e-4, atol=1e-4)

    print("KERNEL_OK")
</pallas_src>

<mosaic_0001>
module attributes {stable_mosaic.version = 11 : i64} {
  func.func @_bilstm_fused_kernel(%arg0: memref<16x256xf32, #tpu.memory_space<vmem>>, %arg1: memref<64x256xf32, #tpu.memory_space<vmem>>, %arg2: memref<10x128xf32, #tpu.memory_space<vmem>>) attributes {dimension_semantics = [], scalar_prefetch = 0 : i64, scratch_operands = 0 : i64, tpu.core_type = #tpu.core_type<tc>} {
    %cst = arith.constant 0.000000e+00 : f32
    %0 = vector.broadcast %cst : f32 to vector<2x64xf32>
    %cst_0 = arith.constant 0.000000e+00 : f32
    %1 = vector.broadcast %cst_0 : f32 to vector<2x64xf32>
    %c0 = arith.constant 0 : index
    %c0_1 = arith.constant 0 : index
    %2 = vector.load %arg0[%c0, %c0_1] : memref<16x256xf32, #tpu.memory_space<vmem>>, vector<2x256xf32>
    %c0_2 = arith.constant 0 : index
    %c0_3 = arith.constant 0 : index
    %3 = vector.load %arg1[%c0_2, %c0_3] : memref<64x256xf32, #tpu.memory_space<vmem>>, vector<64x256xf32>
    %cst_4 = arith.constant dense<0.000000e+00> : vector<2x256xf32>
    %4 = tpu.matmul %0, %3, %cst_4 {dimension_numbers = #tpu.dot_dimension_numbers<[1], [0], [0], [1], [0, 0, 1, 1], [], []>} : vector<2x64xf32>, vector<64x256xf32>, vector<2x256xf32> -> vector<2x256xf32>
    %5 = arith.addf %2, %4 : vector<2x256xf32>
    %6 = vector.extract_strided_slice %5 {offsets = [0, 0], sizes = [2, 192], strides = [1, 1]} : vector<2x256xf32> to vector<2x192xf32>
    %7 = arith.negf %6 : vector<2x192xf32>
    %8 = math.exp %7 : vector<2x192xf32>
    %cst_5 = arith.constant 1.000000e+00 : f32
    %9 = vector.broadcast %cst_5 : f32 to vector<2x192xf32>
    %10 = arith.addf %9, %8 : vector<2x192xf32>
    %11 = arith.divf %9, %10 : vector<2x192xf32>
    %12 = vector.extract_strided_slice %11 {offsets = [0, 0], sizes = [2, 64], strides = [1, 1]} : vector<2x192xf32> to vector<2x64xf32>
    %13 = vector.extract_strided_slice %11 {offsets = [0, 64], sizes = [2, 64], strides = [1, 1]} : vector<2x192xf32> to vector<2x64xf32>
    %14 = vector.extract_strided_slice %11 {offsets = [0, 128], sizes = [2, 64], strides = [1, 1]} : vector<2x192xf32> to vector<2x64xf32>
    %15 = vector.extract_strided_slice %5 {offsets = [0, 192], sizes = [2, 64], strides = [1, 1]} : vector<2x256xf32> to vector<2x64xf32>
    %16 = math.tanh %15 : vector<2x64xf32>
    %17 = arith.mulf %13, %1 : vector<2x64xf32>
    %18 = arith.mulf %12, %16 : vector<2x64xf32>
    %19 = arith.addf %17, %18 : vector<2x64xf32>
    %20 = math.tanh %19 : vector<2x64xf32>
    %21 = arith.mulf %14, %20 : vector<2x64xf32>
    %c2 = arith.constant 2 : index
    %c0_6 = arith.constant 0 : index
    %22 = vector.load %arg0[%c2, %c0_6] : memref<16x256xf32, #tpu.memory_space<vmem>>, vector<2x256xf32>
    %c0_7 = arith.constant 0 : index
    %c0_8 = arith.constant 0 : index
    %23 = vector.load %arg1[%c0_7, %c0_8] : memref<64x256xf32, #tpu.memory_space<vmem>>, vector<64x256xf32>
    %cst_9 = arith.constant dense<0.000000e+00> : vector<2x256xf32>
    %24 = tpu.matmul %21, %23, %cst_9 {dimension_numbers = #tpu.dot_dimension_numbers<[1], [0], [0], [1], [0, 0, 1, 1], [], []>} : vector<2x64xf32>, vector<64x256xf32>, vector<2x256xf32> -> vector<2x256xf32>
    %25 = arith.addf %22, %24 : vector<2x256xf32>
    %26 = vector.extract_strided_slice %25 {offsets = [0, 0], sizes = [2, 192], strides = [1, 1]} : vector<2x256xf32> to vector<2x192xf32>
    %27 = arith.negf %26 : vector<2x192xf32>
    %28 = math.exp %27 : vector<2x192xf32>
    %cst_10 = arith.constant 1.000000e+00 : f32
    %29 = vector.broadcast %cst_10 : f32 to vector<2x192xf32>
    %30 = arith.addf %29, %28 : vector<2x192xf32>
    %31 = arith.divf %29, %30 : vector<2x192xf32>
    %32 = vector.extract_strided_slice %31 {offsets = [0, 0], sizes = [2, 64], strides = [1, 1]} : vector<2x192xf32> to vector<2x64xf32>
    %33 = vector.extract_strided_slice %31 {offsets = [0, 64], sizes = [2, 64], strides = [1, 1]} : vector<2x192xf32> to vector<2x64xf32>
    %34 = vector.extract_strided_slice %31 {offsets = [0, 128], sizes = [2, 64], strides = [1, 1]} : vector<2x192xf32> to vector<2x64xf32>
    %35 = vector.extract_strided_slice %25 {offsets = [0, 192], sizes = [2, 64], strides = [1, 1]} : vector<2x256xf32> to vector<2x64xf32>
    %36 = math.tanh %35 : vector<2x64xf32>
    %37 = arith.mulf %33, %19 : vector<2x64xf32>
    %38 = arith.mulf %32, %36 : vector<2x64xf32>
    %39 = arith.addf %37, %38 : vector<2x64xf32>
    %40 = math.tanh %39 : vector<2x64xf32>
    %41 = arith.mulf %34, %40 : vector<2x64xf32>
    %c4 = arith.constant 4 : index
    %c0_11 = arith.constant 0 : index
    %42 = vector.load %arg0[%c4, %c0_11] : memref<16x256xf32, #tpu.memory_space<vmem>>, vector<2x256xf32>
    %c0_12 = arith.constant 0 : index
    %c0_13 = arith.constant 0 : index
    %43 = vector.load %arg1[%c0_12, %c0_13] : memref<64x256xf32, #tpu.memory_space<vmem>>, vector<64x256xf32>
    %cst_14 = arith.constant dense<0.000000e+00> : vector<2x256xf32>
    %44 = tpu.matmul %41, %43, %cst_14 {dimension_numbers = #tpu.dot_dimension_numbers<[1], [0], [0], [1], [0, 0, 1, 1], [], []>} : vector<2x64xf32>, vector<64x256xf32>, vector<2x256xf32> -> vector<2x256xf32>
    %45 = arith.addf %42, %44 : vector<2x256xf32>
    %46 = vector.extract_strided_slice %45 {offsets = [0, 0], sizes = [2, 192], strides = [1, 1]} : vector<2x256xf32> to vector<2x192xf32>
    %47 = arith.negf %46 : vector<2x192xf32>
    %48 = math.exp %47 : vector<2x192xf32>
    %cst_15 = arith.constant 1.000000e+00 : f32
    %49 = vector.broadcast %cst_15 : f32 to vector<2x192xf32>
    %50 = arith.addf %49, %48 : vector<2x192xf32>
    %51 = arith.divf %49, %50 : vector<2x192xf32>
    %52 = vector.extract_strided_slice %51 {offsets = [0, 0], sizes = [2, 64], strides = [1, 1]} : vector<2x192xf32> to vector<2x64xf32>
    %53 = vector.extract_strided_slice %51 {offsets = [0, 64], sizes = [2, 64], strides = [1, 1]} : vector<2x192xf32> to vector<2x64xf32>
    %54 = vector.extract_strided_slice %51 {offsets = [0, 128], sizes = [2, 64], strides = [1, 1]} : vector<2x192xf32> to vector<2x64xf32>
    %55 = vector.extract_strided_slice %45 {offsets = [0, 192], sizes = [2, 64], strides = [1, 1]} : vector<2x256xf32> to vector<2x64xf32>
    %56 = math.tanh %55 : vector<2x64xf32>
    %57 = arith.mulf %53, %39 : vector<2x64xf32>
    %58 = arith.mulf %52, %56 : vector<2x64xf32>
    %59 = arith.addf %57, %58 : vector<2x64xf32>
    %60 = math.tanh %59 : vector<2x64xf32>
    %61 = arith.mulf %54, %60 : vector<2x64xf32>
    %c6 = arith.constant 6 : index
    %c0_16 = arith.constant 0 : index
    %62 = vector.load %arg0[%c6, %c0_16] : memref<16x256xf32, #tpu.memory_space<vmem>>, vector<2x256xf32>
    %c0_17 = arith.constant 0 : index
    %c0_18 = arith.constant 0 : index
    %63 = vector.load %arg1[%c0_17, %c0_18] : memref<64x256xf32, #tpu.memory_space<vmem>>, vector<64x256xf32>
    %cst_19 = arith.constant dense<0.000000e+00> : vector<2x256xf32>
    %64 = tpu.matmul %61, %63, %cst_19 {dimension_numbers = #tpu.dot_dimension_numbers<[1], [0], [0], [1], [0, 0, 1, 1], [], []>} : vector<2x64xf32>, vector<64x256xf32>, vector<2x256xf32> -> vector<2x256xf32>
    %65 = arith.addf %62, %64 : vector<2x256xf32>
    %66 = vector.extract_strided_slice %65 {offsets = [0, 0], sizes = [2, 192], strides = [1, 1]} : vector<2x256xf32> to vector<2x192xf32>
    %67 = arith.negf %66 : vector<2x192xf32>
    %68 = math.exp %67 : vector<2x192xf32>
    %cst_20 = arith.constant 1.000000e+00 : f32
    %69 = vector.broadcast %cst_20 : f32 to vector<2x192xf32>
    %70 = arith.addf %69, %68 : vector<2x192xf32>
    %71 = arith.divf %69, %70 : vector<2x192xf32>
    %72 = vector.extract_strided_slice %71 {offsets = [0, 0], sizes = [2, 64], strides = [1, 1]} : vector<2x192xf32> to vector<2x64xf32>
    %73 = vector.extract_strided_slice %71 {offsets = [0, 64], sizes = [2, 64], strides = [1, 1]} : vector<2x192xf32> to vector<2x64xf32>
    %74 = vector.extract_strided_slice %71 {offsets = [0, 128], sizes = [2, 64], strides = [1, 1]} : vector<2x192xf32> to vector<2x64xf32>
    %75 = vector.extract_strided_slice %65 {offsets = [0, 192], sizes = [2, 64], strides = [1, 1]} : vector<2x256xf32> to vector<2x64xf32>
    %76 = math.tanh %75 : vector<2x64xf32>
    %77 = arith.mulf %73, %59 : vector<2x64xf32>
    %78 = arith.mulf %72, %76 : vector<2x64xf32>
    %79 = arith.addf %77, %78 : vector<2x64xf32>
    %80 = math.tanh %79 : vector<2x64xf32>
    %81 = arith.mulf %74, %80 : vector<2x64xf32>
    %c8 = arith.constant 8 : index
    %c0_21 = arith.constant 0 : index
    %82 = vector.load %arg0[%c8, %c0_21] : memref<16x256xf32, #tpu.memory_space<vmem>>, vector<2x256xf32>
    %c0_22 = arith.constant 0 : index
    %c0_23 = arith.constant 0 : index
    %83 = vector.load %arg1[%c0_22, %c0_23] : memref<64x256xf32, #tpu.memory_space<vmem>>, vector<64x256xf32>
    %cst_24 = arith.constant dense<0.000000e+00> : vector<2x256xf32>
    %84 = tpu.matmul %81, %83, %cst_24 {dimension_numbers = #tpu.dot_dimension_numbers<[1], [0], [0], [1], [0, 0, 1, 1], [], []>} : vector<2x64xf32>, vector<64x256xf32>, vector<2x256xf32> -> vector<2x256xf32>
    %85 = arith.addf %82, %84 : vector<2x256xf32>
    %86 = vector.extract_strided_slice %85 {offsets = [0, 0], sizes = [2, 192], strides = [1, 1]} : vector<2x256xf32> to vector<2x192xf32>
    %87 = arith.negf %86 : vector<2x192xf32>
    %88 = math.exp %87 : vector<2x192xf32>
    %cst_25 = arith.constant 1.000000e+00 : f32
    %89 = vector.broadcast %cst_25 : f32 to vector<2x192xf32>
    %90 = arith.addf %89, %88 : vector<2x192xf32>
    %91 = arith.divf %89, %90 : vector<2x192xf32>
    %92 = vector.extract_strided_slice %91 {offsets = [0, 0], sizes = [2, 64], strides = [1, 1]} : vector<2x192xf32> to vector<2x64xf32>
    %93 = vector.extract_strided_slice %91 {offsets = [0, 64], sizes = [2, 64], strides = [1, 1]} : vector<2x192xf32> to vector<2x64xf32>
    %94 = vector.extract_strided_slice %91 {offsets = [0, 128], sizes = [2, 64], strides = [1, 1]} : vector<2x192xf32> to vector<2x64xf32>
    %95 = vector.extract_strided_slice %85 {offsets = [0, 192], sizes = [2, 64], strides = [1, 1]} : vector<2x256xf32> to vector<2x64xf32>
    %96 = math.tanh %95 : vector<2x64xf32>
    %97 = arith.mulf %93, %79 : vector<2x64xf32>
    %98 = arith.mulf %92, %96 : vector<2x64xf32>
    %99 = arith.addf %97, %98 : vector<2x64xf32>
    %100 = math.tanh %99 : vector<2x64xf32>
    %101 = arith.mulf %94, %100 : vector<2x64xf32>
    %c10 = arith.constant 10 : index
    %c0_26 = arith.constant 0 : index
    %102 = vector.load %arg0[%c10, %c0_26] : memref<16x256xf32, #tpu.memory_space<vmem>>, vector<2x256xf32>
    %c0_27 = arith.constant 0 : index
    %c0_28 = arith.constant 0 : index
    %103 = vector.load %arg1[%c0_27, %c0_28] : memref<64x256xf32, #tpu.memory_space<vmem>>, vector<64x256xf32>
    %cst_29 = arith.constant dense<0.000000e+00> : vector<2x256xf32>
    %104 = tpu.matmul %101, %103, %cst_29 {dimension_numbers = #tpu.dot_dimension_numbers<[1], [0], [0], [1], [0, 0, 1, 1], [], []>} : vector<2x64xf32>, vector<64x256xf32>, vector<2x256xf32> -> vector<2x256xf32>
    %105 = arith.addf %102, %104 : vector<2x256xf32>
    %106 = vector.extract_strided_slice %105 {offsets = [0, 0], sizes = [2, 192], strides = [1, 1]} : vector<2x256xf32> to vector<2x192xf32>
    %107 = arith.negf %106 : vector<2x192xf32>
    %108 = math.exp %107 : vector<2x192xf32>
    %cst_30 = arith.constant 1.000000e+00 : f32
    %109 = vector.broadcast %cst_30 : f32 to vector<2x192xf32>
    %110 = arith.addf %109, %108 : vector<2x192xf32>
    %111 = arith.divf %109, %110 : vector<2x192xf32>
    %112 = vector.extract_strided_slice %111 {offsets = [0, 0], sizes = [2, 64], strides = [1, 1]} : vector<2x192xf32> to vector<2x64xf32>
    %113 = vector.extract_strided_slice %111 {offsets = [0, 64], sizes = [2, 64], strides = [1, 1]} : vector<2x192xf32> to vector<2x64xf32>
    %114 = vector.extract_strided_slice %111 {offsets = [0, 128], sizes = [2, 64], strides = [1, 1]} : vector<2x192xf32> to vector<2x64xf32>
    %115 = vector.extract_strided_slice %105 {offsets = [0, 192], sizes = [2, 64], strides = [1, 1]} : vector<2x256xf32> to vector<2x64xf32>
    %116 = math.tanh %115 : vector<2x64xf32>
    %117 = arith.mulf %113, %99 : vector<2x64xf32>
    %118 = arith.mulf %112, %116 : vector<2x64xf32>
    %119 = arith.addf %117, %118 : vector<2x64xf32>
    %120 = math.tanh %119 : vector<2x64xf32>
    %121 = arith.mulf %114, %120 : vector<2x64xf32>
    %c12 = arith.constant 12 : index
    %c0_31 = arith.constant 0 : index
    %122 = vector.load %arg0[%c12, %c0_31] : memref<16x256xf32, #tpu.memory_space<vmem>>, vector<2x256xf32>
    %c0_32 = arith.constant 0 : index
    %c0_33 = arith.constant 0 : index
    %123 = vector.load %arg1[%c0_32, %c0_33] : memref<64x256xf32, #tpu.memory_space<vmem>>, vector<64x256xf32>
    %cst_34 = arith.constant dense<0.000000e+00> : vector<2x256xf32>
    %124 = tpu.matmul %121, %123, %cst_34 {dimension_numbers = #tpu.dot_dimension_numbers<[1], [0], [0], [1], [0, 0, 1, 1], [], []>} : vector<2x64xf32>, vector<64x256xf32>, vector<2x256xf32> -> vector<2x256xf32>
    %125 = arith.addf %122, %124 : vector<2x256xf32>
    %126 = vector.extract_strided_slice %125 {offsets = [0, 0], sizes = [2, 192], strides = [1, 1]} : vector<2x256xf32> to vector<2x192xf32>
    %127 = arith.negf %126 : vector<2x192xf32>
    %128 = math.exp %127 : vector<2x192xf32>
    %cst_35 = arith.constant 1.000000e+00 : f32
    %129 = vector.broadcast %cst_35 : f32 to vector<2x192xf32>
    %130 = arith.addf %129, %128 : vector<2x192xf32>
    %131 = arith.divf %129, %130 : vector<2x192xf32>
    %132 = vector.extract_strided_slice %131 {offsets = [0, 0], sizes = [2, 64], strides = [1, 1]} : vector<2x192xf32> to vector<2x64xf32>
    %133 = vector.extract_strided_slice %131 {offsets = [0, 64], sizes = [2, 64], strides = [1, 1]} : vector<2x192xf32> to vector<2x64xf32>
    %134 = vector.extract_strided_slice %131 {offsets = [0, 128], sizes = [2, 64], strides = [1, 1]} : vector<2x192xf32> to vector<2x64xf32>
    %135 = vector.extract_strided_slice %125 {offsets = [0, 192], sizes = [2, 64], strides = [1, 1]} : vector<2x256xf32> to vector<2x64xf32>
    %136 = math.tanh %135 : vector<2x64xf32>
    %137 = arith.mulf %133, %119 : vector<2x64xf32>
    %138 = arith.mulf %132, %136 : vector<2x64xf32>
    %139 = arith.addf %137, %138 : vector<2x64xf32>
    %140 = math.tanh %139 : vector<2x64xf32>
    %141 = arith.mulf %134, %140 : vector<2x64xf32>
    %c14 = arith.constant 14 : index
    %c0_36 = arith.constant 0 : index
    %142 = vector.load %arg0[%c14, %c0_36] : memref<16x256xf32, #tpu.memory_space<vmem>>, vector<2x256xf32>
    %c0_37 = arith.constant 0 : index
    %c0_38 = arith.constant 0 : index
    %143 = vector.load %arg1[%c0_37, %c0_38] : memref<64x256xf32, #tpu.memory_space<vmem>>, vector<64x256xf32>
    %cst_39 = arith.constant dense<0.000000e+00> : vector<2x256xf32>
    %144 = tpu.matmul %141, %143, %cst_39 {dimension_numbers = #tpu.dot_dimension_numbers<[1], [0], [0], [1], [0, 0, 1, 1], [], []>} : vector<2x64xf32>, vector<64x256xf32>, vector<2x256xf32> -> vector<2x256xf32>
    %145 = arith.addf %142, %144 : vector<2x256xf32>
    %146 = vector.extract_strided_slice %145 {offsets = [0, 0], sizes = [2, 192], strides = [1, 1]} : vector<2x256xf32> to vector<2x192xf32>
    %147 = arith.negf %146 : vector<2x192xf32>
    %148 = math.exp %147 : vector<2x192xf32>
    %cst_40 = arith.constant 1.000000e+00 : f32
    %149 = vector.broadcast %cst_40 : f32 to vector<2x192xf32>
    %150 = arith.addf %149, %148 : vector<2x192xf32>
    %151 = arith.divf %149, %150 : vector<2x192xf32>
    %152 = vector.extract_strided_slice %151 {offsets = [0, 0], sizes = [2, 64], strides = [1, 1]} : vector<2x192xf32> to vector<2x64xf32>
    %153 = vector.extract_strided_slice %151 {offsets = [0, 64], sizes = [2, 64], strides = [1, 1]} : vector<2x192xf32> to vector<2x64xf32>
    %154 = vector.extract_strided_slice %151 {offsets = [0, 128], sizes = [2, 64], strides = [1, 1]} : vector<2x192xf32> to vector<2x64xf32>
    %155 = vector.extract_strided_slice %145 {offsets = [0, 192], sizes = [2, 64], strides = [1, 1]} : vector<2x256xf32> to vector<2x64xf32>
    %156 = math.tanh %155 : vector<2x64xf32>
    %157 = arith.mulf %153, %139 : vector<2x64xf32>
    %158 = arith.mulf %152, %156 : vector<2x64xf32>
    %159 = arith.addf %157, %158 : vector<2x64xf32>
    %160 = math.tanh %159 : vector<2x64xf32>
    %161 = arith.mulf %154, %160 : vector<2x64xf32>
    %162 = tpu.iota {dimensions = array<i32: 1>} : vector<2x64xi32>
    %c32_i32 = arith.constant 32 : i32
    %163 = vector.broadcast %c32_i32 : i32 to vector<2x64xi32>
    %164 = arith.cmpi slt, %162, %163 : vector<2x64xi32>
    %165 = arith.select %164, %21, %161 : vector<2x64xi1>, vector<2x64xf32>
    %166 = arith.select %164, %41, %141 : vector<2x64xi1>, vector<2x64xf32>
    %167 = arith.select %164, %61, %121 : vector<2x64xi1>, vector<2x64xf32>
    %168 = arith.select %164, %81, %101 : vector<2x64xi1>, vector<2x64xf32>
    %169 = arith.select %164, %101, %81 : vector<2x64xi1>, vector<2x64xf32>
    %170 = arith.select %164, %121, %61 : vector<2x64xi1>, vector<2x64xf32>
    %171 = arith.select %164, %141, %41 : vector<2x64xi1>, vector<2x64xf32>
    %172 = arith.select %164, %161, %21 : vector<2x64xi1>, vector<2x64xf32>
    %173 = tpu.concatenate %165, %166, %167, %168 in 0 : vector<2x64xf32>, vector<2x64xf32>, vector<2x64xf32>, vector<2x64xf32> -> vector<8x64xf32>
    %174 = tpu.concatenate %169, %170, %171, %172 in 0 : vector<2x64xf32>, vector<2x64xf32>, vector<2x64xf32>, vector<2x64xf32> -> vector<8x64xf32>
    %175 = tpu.concatenate %173, %174 in 1 : vector<8x64xf32>, vector<8x64xf32> -> vector<8x128xf32>
    %176 = tpu.concatenate %161, %159 in 1 : vector<2x64xf32>, vector<2x64xf32> -> vector<2x128xf32>
    %177 = tpu.concatenate %175, %176 in 0 : vector<8x128xf32>, vector<2x128xf32> -> vector<10x128xf32>
    %c0_41 = arith.constant 0 : index
    %c0_42 = arith.constant 0 : index
    %178 = vector.load %arg2[%c0_41, %c0_42] : memref<10x128xf32, #tpu.memory_space<vmem>>, vector<10x128xf32>
    tpu.vector_store %arg2[%c0_41, %c0_42], %177 {strides = array<i32>} : memref<10x128xf32, #tpu.memory_space<vmem>>, vector<10x128xf32>,
    return
  }
}

</mosaic_0001>

<llo_original>
// kernel: encoder_rnn_forward.1
$region0: #{encoder_rnn_forward.1}
  #allocation0 [shape = 'u32[]', space=smem, size = 0x4, offset = 0x4, fixed_abs, tag = 'smem constant byte address 0x4 - core index']
  #allocation1 [shape = 'u32[144,128]{1,0:T(1,128)}', space=vmem, size = 0x12000, scoped, tag = 'internal scratch']
  %s0 = inlined_call_operand.vmem [shape: f32[16,256], index: 0, kind: input, shape index: {}]
  %s1 = inlined_call_operand.vmem [shape: f32[64,256], index: 1, kind: input, shape index: {}]
  %s2 = inlined_call_operand.vmem [shape: f32[10,128], index: 2, kind: output, shape index: {}]
  %s3 = sld [smem:[#allocation0]]
  $region18: #{encoder_rnn_forward.1} parent=0
    _
  %s5 = ssub.s32 1, %s3
  %s6 = scalar_select 0, %s5, %s3
  // Predicated region
  $region2: #{encoder_rnn_forward.1} parent=0 // pred_check
    _
  $region3: #{encoder_rnn_forward.1} parent=0 // pred_check_branch
    %8 = sbr.rel (0) target = $region5
  $region4: #{encoder_rnn_forward.1} parent=0 // pred_region
    _
  $region5: #{encoder_rnn_forward.1} parent=0 // pred_fallthru
    _
  // Predicated region
  $region6: #{encoder_rnn_forward.1} parent=0 // pred_check
    _
  $region7: #{encoder_rnn_forward.1} parent=0 // pred_check_branch
    %10 = sbr.rel (0) target = $region9
  $region8: #{encoder_rnn_forward.1} parent=0 // pred_region
    _
  $region9: #{encoder_rnn_forward.1} parent=0 // pred_fallthru
    _
  %v11 = vld [vmem:[%s0] sm:$0x3]
  %v12 = vld [vmem:[%s0 + $0x8] sm:$0x3]
  %v13 = vld [vmem:[%s1] sm:$0xff]
  %v14 = vld [vmem:[%s1 + $0x8] sm:$0xff]
  %v15 = vld [vmem:[%s1 + $0x10] sm:$0xff]
  %v16 = vld [vmem:[%s1 + $0x18] sm:$0xff]
  %v17 = vld [vmem:[%s1 + $0x20] sm:$0xff]
  %v18 = vld [vmem:[%s1 + $0x28] sm:$0xff]
  %v19 = vld [vmem:[%s1 + $0x30] sm:$0xff]
  %v20 = vld [vmem:[%s1 + $0x38] sm:$0xff]
  %v21 = vld [vmem:[%s1 + $0x40] sm:$0xff]
  %v22 = vld [vmem:[%s1 + $0x48] sm:$0xff]
  %v23 = vld [vmem:[%s1 + $0x50] sm:$0xff]
  %v24 = vld [vmem:[%s1 + $0x58] sm:$0xff]
  %v25 = vld [vmem:[%s1 + $0x60] sm:$0xff]
  %v26 = vld [vmem:[%s1 + $0x68] sm:$0xff]
  %v27 = vld [vmem:[%s1 + $0x70] sm:$0xff]
  %v28 = vld [vmem:[%s1 + $0x78] sm:$0xff]
  %vm29 = vcmask 523264
  %v31 = vsel %vm29, 0.0, 0
  %33 = vmatprep.subr.mxu0 %v14
  %34 = vmatpush1.msra.mxu0 %v13
  %35 = vmatprep.subr.mxu0 %v16
  %36 = vmatpush1.msra.mxu0 %v15
  %37 = vmatprep.subr.mxu0 %v18
  %38 = vmatpush1.msra.mxu0 %v17
  %39 = vmatprep.subr.mxu0 %v20
  %40 = vmatpush1.msra.mxu0 %v19
  %41 = vmatprep.subr.mxu0 %v22
  %42 = vmatpush1.msra.mxu0 %v21
  %43 = vmatprep.subr.mxu0 %v24
  %44 = vmatpush1.msra.mxu0 %v23
  %45 = vmatprep.subr.mxu0 %v26
  %46 = vmatpush1.msra.mxu0 %v25
  %47 = vmatprep.subr.mxu0 %v28
  %48 = vmatpush1.msra.mxu0 %v27
  %49 = vmatprep.subr.mxu0 0.0
  %50 = vmatpush1.msra.mxu0 0.0
  %51 = vmatprep.subr.mxu0 0.0
  %52 = vmatpush1.msra.mxu0 0.0
  %53 = vmatprep.subr.mxu0 0.0
  %54 = vmatpush1.msra.mxu0 0.0
  %55 = vmatprep.subr.mxu0 0.0
  %56 = vmatpush1.msra.mxu0 0.0
  %57 = vmatprep.subr.mxu0 0.0
  %58 = vmatpush1.msra.mxu0 0.0
  %59 = vmatprep.subr.mxu0 0.0
  %60 = vmatpush1.msra.mxu0 0.0
  %61 = vmatprep.subr.mxu0 0.0
  %62 = vmatpush1.msra.mxu0 0.0
  %63 = vmatprep.subr.mxu0 0.0
  %64 = vmatpush1.msra.mxu0 0.0
  %65 = vmatprep.subr.mxu0 0.0
  %66 = vmatpush1.msra.mxu0 0.0
  %67 = vmatprep.subr.mxu0 0.0
  %68 = vmatpush1.msra.mxu0 0.0
  %69 = vmatprep.subr.mxu0 0.0
  %70 = vmatpush1.msra.mxu0 0.0
  %71 = vmatprep.subr.mxu0 0.0
  %72 = vmatpush1.msra.mxu0 0.0
  %73 = vmatprep.subr.mxu0 0.0
  %74 = vmatpush1.msra.mxu0 0.0
  %75 = vmatprep.subr.mxu0 0.0
  %76 = vmatpush1.msra.mxu0 0.0
  %77 = vmatprep.subr.mxu0 0.0
  %78 = vmatpush1.msra.mxu0 0.0
  %79 = vmatprep.subr.mxu0 0.0
  %80 = vmatpush1.msra.mxu0 0.0
  %81 = vmatprep.subr.mxu0 0.0
  %82 = vmatpush1.msra.mxu0 0.0
  %83 = vmatprep.subr.mxu0 0.0
  %84 = vmatpush1.msra.mxu0 0.0
  %85 = vmatprep.subr.mxu0 0.0
  %86 = vmatpush1.msra.mxu0 0.0
  %87 = vmatprep.subr.mxu0 0.0
  %88 = vmatpush1.msra.mxu0 0.0
  %89 = vmatprep.subr.mxu0 0.0
  %90 = vmatpush1.msra.mxu0 0.0
  %91 = vmatprep.subr.mxu0 0.0
  %92 = vmatpush1.msra.mxu0 0.0
  %93 = vmatprep.subr.mxu0 0.0
  %94 = vmatpush1.msra.mxu0 0.0
  %95 = vmatprep.subr.mxu0 0.0
  %96 = vmatpush1.msra.mxu0 0.0
  %97 = vmatprep.mubr.f32.mxu0 0.0
  %98 = vmatmul.mubr.f32.gmra.mrb[0].mxu0 %v31
  %v99 = vpop.f32.mrb[0].mxu0
  %v100 = vadd.f32 0.0, %v99
  %v101 = vpop.f32.mrb[0].mxu0
  %v102 = vadd.f32 0.0, %v101
  %103 = vdwg.mxu0
  %v104 = vadd.f32 %v11, %v100
  %v105 = vadd.f32 %v12, %v102
  %v106 = vxor.u32 %v104, 2147483648
  %v107 = vxor.u32 %v105, 2147483648
  %v108 = vmul.f32 %v106, 1.442695
  %v109 = vpow.pop %v108
  %v110 = vmul.f32 %v107, 1.442695
  %v111 = vpow.pop %v110
  %v112 = vadd.f32 %v109, 1.0
  %v113 = vadd.f32 %v111, 1.0
  %v114 = vrcp.pop %v112
  %v115 = vmul.f32 1.0, %v114
  %v116 = vrcp.pop %v113
  %v117 = vmul.f32 1.0, %v116
  %v118 = vtanh.pop %v105
  %v119 = vmul.f32 %v115, 0.0
  %121 = vrot.lane.b32.xlu0 %v118, 64
  %v122 = vpop.permute.xlu0 %121
  %v124 = vmul.f32 %v115, %v122
  %126 = vrot.lane.b32.xlu0 %v124, 64
  %v127 = vpop.permute.xlu0 %126
  %v129 = vadd.f32 %v119, %v127
  %v130 = vtanh.pop %v129
  %132 = vrot.lane.b32.xlu0 %v130, 64
  %v133 = vpop.permute.xlu0 %132
  %v135 = vmul.f32 %v117, %v133
  %v136 = vld [vmem:[%s0] sm:$0xc]
  %v137 = vld [vmem:[%s0 + $0x8] sm:$0xc]
  %v139 = vsel %vm29, %v135, 0
  %141 = vmatprep.subr.mxu0 %v14
  %142 = vmatpush1.msra.mxu0 %v13
  %143 = vmatprep.subr.mxu0 %v16
  %144 = vmatpush1.msra.mxu0 %v15
  %145 = vmatprep.subr.mxu0 %v18
  %146 = vmatpush1.msra.mxu0 %v17
  %147 = vmatprep.subr.mxu0 %v20
  %148 = vmatpush1.msra.mxu0 %v19
  %149 = vmatprep.subr.mxu0 %v22
  %150 = vmatpush1.msra.mxu0 %v21
  %151 = vmatprep.subr.mxu0 %v24
  %152 = vmatpush1.msra.mxu0 %v23
  %153 = vmatprep.subr.mxu0 %v26
  %154 = vmatpush1.msra.mxu0 %v25
  %155 = vmatprep.subr.mxu0 %v28
  %156 = vmatpush1.msra.mxu0 %v27
  %157 = vmatprep.subr.mxu0 0.0
  %158 = vmatpush1.msra.mxu0 0.0
  %159 = vmatprep.subr.mxu0 0.0
  %160 = vmatpush1.msra.mxu0 0.0
  %161 = vmatprep.subr.mxu0 0.0
  %162 = vmatpush1.msra.mxu0 0.0
  %163 = vmatprep.subr.mxu0 0.0
  %164 = vmatpush1.msra.mxu0 0.0
  %165 = vmatprep.subr.mxu0 0.0
  %166 = vmatpush1.msra.mxu0 0.0
  %167 = vmatprep.subr.mxu0 0.0
  %168 = vmatpush1.msra.mxu0 0.0
  %169 = vmatprep.subr.mxu0 0.0
  %170 = vmatpush1.msra.mxu0 0.0
  %171 = vmatprep.subr.mxu0 0.0
  %172 = vmatpush1.msra.mxu0 0.0
  %173 = vmatprep.subr.mxu0 0.0
  %174 = vmatpush1.msra.mxu0 0.0
  %175 = vmatprep.subr.mxu0 0.0
  %176 = vmatpush1.msra.mxu0 0.0
  %177 = vmatprep.subr.mxu0 0.0
  %178 = vmatpush1.msra.mxu0 0.0
  %179 = vmatprep.subr.mxu0 0.0
  %180 = vmatpush1.msra.mxu0 0.0
  %181 = vmatprep.subr.mxu0 0.0
  %182 = vmatpush1.msra.mxu0 0.0
  %183 = vmatprep.subr.mxu0 0.0
  %184 = vmatpush1.msra.mxu0 0.0
  %185 = vmatprep.subr.mxu0 0.0
  %186 = vmatpush1.msra.mxu0 0.0
  %187 = vmatprep.subr.mxu0 0.0
  %188 = vmatpush1.msra.mxu0 0.0
  %189 = vmatprep.subr.mxu0 0.0
  %190 = vmatpush1.msra.mxu0 0.0
  %191 = vmatprep.subr.mxu0 0.0
  %192 = vmatpush1.msra.mxu0 0.0
  %193 = vmatprep.subr.mxu0 0.0
  %194 = vmatpush1.msra.mxu0 0.0
  %195 = vmatprep.subr.mxu0 0.0
  %196 = vmatpush1.msra.mxu0 0.0
  %197 = vmatprep.subr.mxu0 0.0
  %198 = vmatpush1.msra.mxu0 0.0
  %199 = vmatprep.subr.mxu0 0.0
  %200 = vmatpush1.msra.mxu0 0.0
  %201 = vmatprep.subr.mxu0 0.0
  %202 = vmatpush1.msra.mxu0 0.0
  %203 = vmatprep.subr.mxu0 0.0
  %204 = vmatpush1.msra.mxu0 0.0
  %205 = vmatprep.mubr.f32.mxu0 0.0
  %206 = vmatmul.mubr.f32.gmra.mrb[0].mxu0 %v139
  %v207 = vpop.f32.mrb[0].mxu0
  %v208 = vadd.f32 0.0, %v207
  %v209 = vpop.f32.mrb[0].mxu0
  %v210 = vadd.f32 0.0, %v209
  %211 = vdwg.mxu0
  %v214 = vrot.slane %v208, 6
  %v215 = vrot.slane %v210, 6
  %v218 = vadd.f32 %v136, %v214
  %v219 = vadd.f32 %v137, %v215
  %v220 = vxor.u32 %v218, 2147483648
  %v221 = vxor.u32 %v219, 2147483648
  %v222 = vmul.f32 %v220, 1.442695
  %v223 = vpow.pop %v222
  %v224 = vmul.f32 %v221, 1.442695
  %v225 = vpow.pop %v224
  %v226 = vadd.f32 %v223, 1.0
  %v227 = vadd.f32 %v225, 1.0
  %v228 = vrcp.pop %v226
  %v229 = vmul.f32 1.0, %v228
  %v230 = vrcp.pop %v227
  %v231 = vmul.f32 1.0, %v230
  %v232 = vtanh.pop %v219
  %v234 = vrot.slane %v129, 6
  %v236 = vmul.f32 %v229, %v234
  %238 = vrot.lane.b32.xlu0 %v232, 64
  %v239 = vpop.permute.xlu0 %238
  %v241 = vmul.f32 %v229, %v239
  %243 = vrot.lane.b32.xlu0 %v241, 64
  %v244 = vpop.permute.xlu0 %243
  %v246 = vadd.f32 %v236, %v244
  %v247 = vtanh.pop %v246
  %249 = vrot.lane.b32.xlu0 %v247, 64
  %v250 = vpop.permute.xlu0 %249
  %v252 = vmul.f32 %v231, %v250
  %v253 = vld [vmem:[%s0] sm:$0x30]
  %v254 = vld [vmem:[%s0 + $0x8] sm:$0x30]
  %v256 = vrot.slane %v252, 2
  %v257 = vsel %vm29, %v256, 0
  %259 = vmatprep.subr.mxu0 %v14
  %260 = vmatpush1.msra.mxu0 %v13
  %261 = vmatprep.subr.mxu0 %v16
  %262 = vmatpush1.msra.mxu0 %v15
  %263 = vmatprep.subr.mxu0 %v18
  %264 = vmatpush1.msra.mxu0 %v17
  %265 = vmatprep.subr.mxu0 %v20
  %266 = vmatpush1.msra.mxu0 %v19
  %267 = vmatprep.subr.mxu0 %v22
  %268 = vmatpush1.msra.mxu0 %v21
  %269 = vmatprep.subr.mxu0 %v24
  %270 = vmatpush1.msra.mxu0 %v23
  %271 = vmatprep.subr.mxu0 %v26
  %272 = vmatpush1.msra.mxu0 %v25
  %273 = vmatprep.subr.mxu0 %v28
  %274 = vmatpush1.msra.mxu0 %v27
  %275 = vmatprep.subr.mxu0 0.0
  %276 = vmatpush1.msra.mxu0 0.0
  %277 = vmatprep.subr.mxu0 0.0
  %278 = vmatpush1.msra.mxu0 0.0
  %279 = vmatprep.subr.mxu0 0.0
  %280 = vmatpush1.msra.mxu0 0.0
  %281 = vmatprep.subr.mxu0 0.0
  %282 = vmatpush1.msra.mxu0 0.0
  %283 = vmatprep.subr.mxu0 0.0
  %284 = vmatpush1.msra.mxu0 0.0
  %285 = vmatprep.subr.mxu0 0.0
  %286 = vmatpush1.msra.mxu0 0.0
  %287 = vmatprep.subr.mxu0 0.0
  %288 = vmatpush1.msra.mxu0 0.0
  %289 = vmatprep.subr.mxu0 0.0
  %290 = vmatpush1.msra.mxu0 0.0
  %291 = vmatprep.subr.mxu0 0.0
  %292 = vmatpush1.msra.mxu0 0.0
  %293 = vmatprep.subr.mxu0 0.0
  %294 = vmatpush1.msra.mxu0 0.0
  %295 = vmatprep.subr.mxu0 0.0
  %296 = vmatpush1.msra.mxu0 0.0
  %297 = vmatprep.subr.mxu0 0.0
  %298 = vmatpush1.msra.mxu0 0.0
  %299 = vmatprep.subr.mxu0 0.0
  %300 = vmatpush1.msra.mxu0 0.0
  %301 = vmatprep.subr.mxu0 0.0
  %302 = vmatpush1.msra.mxu0 0.0
  %303 = vmatprep.subr.mxu0 0.0
  %304 = vmatpush1.msra.mxu0 0.0
  %305 = vmatprep.subr.mxu0 0.0
  %306 = vmatpush1.msra.mxu0 0.0
  %307 = vmatprep.subr.mxu0 0.0
  %308 = vmatpush1.msra.mxu0 0.0
  %309 = vmatprep.subr.mxu0 0.0
  %310 = vmatpush1.msra.mxu0 0.0
  %311 = vmatprep.subr.mxu0 0.0
  %312 = vmatpush1.msra.mxu0 0.0
  %313 = vmatprep.subr.mxu0 0.0
  %314 = vmatpush1.msra.mxu0 0.0
  %315 = vmatprep.subr.mxu0 0.0
  %316 = vmatpush1.msra.mxu0 0.0
  %317 = vmatprep.subr.mxu0 0.0
  %318 = vmatpush1.msra.mxu0 0.0
  %319 = vmatprep.subr.mxu0 0.0
  %320 = vmatpush1.msra.mxu0 0.0
  %321 = vmatprep.subr.mxu0 0.0
  %322 = vmatpush1.msra.mxu0 0.0
  %323 = vmatprep.mubr.f32.mxu0 0.0
  %324 = vmatmul.mubr.f32.gmra.mrb[0].mxu0 %v257
  %v325 = vpop.f32.mrb[0].mxu0
  %v326 = vadd.f32 0.0, %v325
  %v327 = vpop.f32.mrb[0].mxu0
  %v328 = vadd.f32 0.0, %v327
  %329 = vdwg.mxu0
  %v332 = vrot.slane %v326, 4
  %v333 = vrot.slane %v328, 4
  %v336 = vadd.f32 %v253, %v332
  %v337 = vadd.f32 %v254, %v333
  %v338 = vxor.u32 %v336, 2147483648
  %v339 = vxor.u32 %v337, 2147483648
  %v340 = vmul.f32 %v338, 1.442695
  %v341 = vpow.pop %v340
  %v342 = vmul.f32 %v339, 1.442695
  %v343 = vpow.pop %v342
  %v344 = vadd.f32 %v341, 1.0
  %v345 = vadd.f32 %v343, 1.0
  %v346 = vrcp.pop %v344
  %v347 = vmul.f32 1.0, %v346
  %v348 = vrcp.pop %v345
  %v349 = vmul.f32 1.0, %v348
  %v350 = vtanh.pop %v337
  %v352 = vrot.slane %v246, 6
  %v354 = vmul.f32 %v347, %v352
  %356 = vrot.lane.b32.xlu0 %v350, 64
  %v357 = vpop.permute.xlu0 %356
  %v359 = vmul.f32 %v347, %v357
  %361 = vrot.lane.b32.xlu0 %v359, 64
  %v362 = vpop.permute.xlu0 %361
  %v364 = vadd.f32 %v354, %v362
  %v365 = vtanh.pop %v364
  %367 = vrot.lane.b32.xlu0 %v365, 64
  %v368 = vpop.permute.xlu0 %367
  %v370 = vmul.f32 %v349, %v368
  %v371 = vld [vmem:[%s0] sm:$0xc0]
  %v372 = vld [vmem:[%s0 + $0x8] sm:$0xc0]
  %v374 = vrot.slane %v370, 4
  %v375 = vsel %vm29, %v374, 0
  %377 = vmatprep.subr.mxu0 %v14
  %378 = vmatpush1.msra.mxu0 %v13
  %379 = vmatprep.subr.mxu0 %v16
  %380 = vmatpush1.msra.mxu0 %v15
  %381 = vmatprep.subr.mxu0 %v18
  %382 = vmatpush1.msra.mxu0 %v17
  %383 = vmatprep.subr.mxu0 %v20
  %384 = vmatpush1.msra.mxu0 %v19
  %385 = vmatprep.subr.mxu0 %v22
  %386 = vmatpush1.msra.mxu0 %v21
  %387 = vmatprep.subr.mxu0 %v24
  %388 = vmatpush1.msra.mxu0 %v23
  %389 = vmatprep.subr.mxu0 %v26
  %390 = vmatpush1.msra.mxu0 %v25
  %391 = vmatprep.subr.mxu0 %v28
  %392 = vmatpush1.msra.mxu0 %v27
  %393 = vmatprep.subr.mxu0 0.0
  %394 = vmatpush1.msra.mxu0 0.0
  %395 = vmatprep.subr.mxu0 0.0
  %396 = vmatpush1.msra.mxu0 0.0
  %397 = vmatprep.subr.mxu0 0.0
  %398 = vmatpush1.msra.mxu0 0.0
  %399 = vmatprep.subr.mxu0 0.0
  %400 = vmatpush1.msra.mxu0 0.0
  %401 = vmatprep.subr.mxu0 0.0
  %402 = vmatpush1.msra.mxu0 0.0
  %403 = vmatprep.subr.mxu0 0.0
  %404 = vmatpush1.msra.mxu0 0.0
  %405 = vmatprep.subr.mxu0 0.0
  %406 = vmatpush1.msra.mxu0 0.0
  %407 = vmatprep.subr.mxu0 0.0
  %408 = vmatpush1.msra.mxu0 0.0
  %409 = vmatprep.subr.mxu0 0.0
  %410 = vmatpush1.msra.mxu0 0.0
  %411 = vmatprep.subr.mxu0 0.0
  %412 = vmatpush1.msra.mxu0 0.0
  %413 = vmatprep.subr.mxu0 0.0
  %414 = vmatpush1.msra.mxu0 0.0
  %415 = vmatprep.subr.mxu0 0.0
  %416 = vmatpush1.msra.mxu0 0.0
  %417 = vmatprep.subr.mxu0 0.0
  %418 = vmatpush1.msra.mxu0 0.0
  %419 = vmatprep.subr.mxu0 0.0
  %420 = vmatpush1.msra.mxu0 0.0
  %421 = vmatprep.subr.mxu0 0.0
  %422 = vmatpush1.msra.mxu0 0.0
  %423 = vmatprep.subr.mxu0 0.0
  %424 = vmatpush1.msra.mxu0 0.0
  %425 = vmatprep.subr.mxu0 0.0
  %426 = vmatpush1.msra.mxu0 0.0
  %427 = vmatprep.subr.mxu0 0.0
  %428 = vmatpush1.msra.mxu0 0.0
  %429 = vmatprep.subr.mxu0 0.0
  %430 = vmatpush1.msra.mxu0 0.0
  %431 = vmatprep.subr.mxu0 0.0
  %432 = vmatpush1.msra.mxu0 0.0
  %433 = vmatprep.subr.mxu0 0.0
  %434 = vmatpush1.msra.mxu0 0.0
  %435 = vmatprep.subr.mxu0 0.0
  %436 = vmatpush1.msra.mxu0 0.0
  %437 = vmatprep.subr.mxu0 0.0
  %438 = vmatpush1.msra.mxu0 0.0
  %439 = vmatprep.subr.mxu0 0.0
  %440 = vmatpush1.msra.mxu0 0.0
  %441 = vmatprep.mubr.f32.mxu0 0.0
  %442 = vmatmul.mubr.f32.gmra.mrb[0].mxu0 %v375
  %v443 = vpop.f32.mrb[0].mxu0
  %v444 = vadd.f32 0.0, %v443
  %v445 = vpop.f32.mrb[0].mxu0
  %v446 = vadd.f32 0.0, %v445
  %447 = vdwg.mxu0
  %v450 = vrot.slane %v444, 2
  %v451 = vrot.slane %v446, 2
  %v454 = vadd.f32 %v371, %v450
  %v455 = vadd.f32 %v372, %v451
  %v456 = vxor.u32 %v454, 2147483648
  %v457 = vxor.u32 %v455, 2147483648
  %v458 = vmul.f32 %v456, 1.442695
  %v459 = vpow.pop %v458
  %v460 = vmul.f32 %v457, 1.442695
  %v461 = vpow.pop %v460
  %v462 = vadd.f32 %v459, 1.0
  %v463 = vadd.f32 %v461, 1.0
  %v464 = vrcp.pop %v462
  %v465 = vmul.f32 1.0, %v464
  %v466 = vrcp.pop %v463
  %v467 = vmul.f32 1.0, %v466
  %v468 = vtanh.pop %v455
  %v470 = vrot.slane %v364, 6
  %v472 = vmul.f32 %v465, %v470
  %474 = vrot.lane.b32.xlu0 %v468, 64
  %v475 = vpop.permute.xlu0 %474
  %v477 = vmul.f32 %v465, %v475
  %479 = vrot.lane.b32.xlu0 %v477, 64
  %v480 = vpop.permute.xlu0 %479
  %v482 = vadd.f32 %v472, %v480
  %v483 = vtanh.pop %v482
  %485 = vrot.lane.b32.xlu0 %v483, 64
  %v486 = vpop.permute.xlu0 %485
  %v488 = vmul.f32 %v467, %v486
  %v489 = vld [vmem:[%s0 + $0x10] sm:$0x3]
  %v490 = vld [vmem:[%s0 + $0x18] sm:$0x3]
  %v492 = vrot.slane %v488, 6
  %v493 = vsel %vm29, %v492, 0
  %495 = vmatprep.subr.mxu0 %v14
  %496 = vmatpush1.msra.mxu0 %v13
  %497 = vmatprep.subr.mxu0 %v16
  %498 = vmatpush1.msra.mxu0 %v15
  %499 = vmatprep.subr.mxu0 %v18
  %500 = vmatpush1.msra.mxu0 %v17
  %501 = vmatprep.subr.mxu0 %v20
  %502 = vmatpush1.msra.mxu0 %v19
  %503 = vmatprep.subr.mxu0 %v22
  %504 = vmatpush1.msra.mxu0 %v21
  %505 = vmatprep.subr.mxu0 %v24
  %506 = vmatpush1.msra.mxu0 %v23
  %507 = vmatprep.subr.mxu0 %v26
  %508 = vmatpush1.msra.mxu0 %v25
  %509 = vmatprep.subr.mxu0 %v28
  %510 = vmatpush1.msra.mxu0 %v27
  %511 = vmatprep.subr.mxu0 0.0
  %512 = vmatpush1.msra.mxu0 0.0
  %513 = vmatprep.subr.mxu0 0.0
  %514 = vmatpush1.msra.mxu0 0.0
  %515 = vmatprep.subr.mxu0 0.0
  %516 = vmatpush1.msra.mxu0 0.0
  %517 = vmatprep.subr.mxu0 0.0
  %518 = vmatpush1.msra.mxu0 0.0
  %519 = vmatprep.subr.mxu0 0.0
  %520 = vmatpush1.msra.mxu0 0.0
  %521 = vmatprep.subr.mxu0 0.0
  %522 = vmatpush1.msra.mxu0 0.0
  %523 = vmatprep.subr.mxu0 0.0
  %524 = vmatpush1.msra.mxu0 0.0
  %525 = vmatprep.subr.mxu0 0.0
  %526 = vmatpush1.msra.mxu0 0.0
  %527 = vmatprep.subr.mxu0 0.0
  %528 = vmatpush1.msra.mxu0 0.0
  %529 = vmatprep.subr.mxu0 0.0
  %530 = vmatpush1.msra.mxu0 0.0
  %531 = vmatprep.subr.mxu0 0.0
  %532 = vmatpush1.msra.mxu0 0.0
  %533 = vmatprep.subr.mxu0 0.0
  %534 = vmatpush1.msra.mxu0 0.0
  %535 = vmatprep.subr.mxu0 0.0
  %536 = vmatpush1.msra.mxu0 0.0
  %537 = vmatprep.subr.mxu0 0.0
  %538 = vmatpush1.msra.mxu0 0.0
  %539 = vmatprep.subr.mxu0 0.0
  %540 = vmatpush1.msra.mxu0 0.0
  %541 = vmatprep.subr.mxu0 0.0
  %542 = vmatpush1.msra.mxu0 0.0
  %543 = vmatprep.subr.mxu0 0.0
  %544 = vmatpush1.msra.mxu0 0.0
  %545 = vmatprep.subr.mxu0 0.0
  %546 = vmatpush1.msra.mxu0 0.0
  %547 = vmatprep.subr.mxu0 0.0
  %548 = vmatpush1.msra.mxu0 0.0
  %549 = vmatprep.subr.mxu0 0.0
  %550 = vmatpush1.msra.mxu0 0.0
  %551 = vmatprep.subr.mxu0 0.0
  %552 = vmatpush1.msra.mxu0 0.0
  %553 = vmatprep.subr.mxu0 0.0
  %554 = vmatpush1.msra.mxu0 0.0
  %555 = vmatprep.subr.mxu0 0.0
  %556 = vmatpush1.msra.mxu0 0.0
  %557 = vmatprep.subr.mxu0 0.0
  %558 = vmatpush1.msra.mxu0 0.0
  %559 = vmatprep.mubr.f32.mxu0 0.0
  %560 = vmatmul.mubr.f32.gmra.mrb[0].mxu0 %v493
  %v561 = vpop.f32.mrb[0].mxu0
  %v562 = vadd.f32 0.0, %v561
  %v563 = vpop.f32.mrb[0].mxu0
  %v564 = vadd.f32 0.0, %v563
  %565 = vdwg.mxu0
  %v566 = vadd.f32 %v489, %v562
  %v567 = vadd.f32 %v490, %v564
  %v568 = vxor.u32 %v566, 2147483648
  %v569 = vxor.u32 %v567, 2147483648
  %v570 = vmul.f32 %v568, 1.442695
  %v571 = vpow.pop %v570
  %v572 = vmul.f32 %v569, 1.442695
  %v573 = vpow.pop %v572
  %v574 = vadd.f32 %v571, 1.0
  %v575 = vadd.f32 %v573, 1.0
  %v576 = vrcp.pop %v574
  %v577 = vmul.f32 1.0, %v576
  %v578 = vrcp.pop %v575
  %v579 = vmul.f32 1.0, %v578
  %v580 = vtanh.pop %v567
  %v582 = vrot.slane %v482, 6
  %v584 = vmul.f32 %v577, %v582
  %586 = vrot.lane.b32.xlu0 %v580, 64
  %v587 = vpop.permute.xlu0 %586
  %v589 = vmul.f32 %v577, %v587
  %591 = vrot.lane.b32.xlu0 %v589, 64
  %v592 = vpop.permute.xlu0 %591
  %v594 = vadd.f32 %v584, %v592
  %v595 = vtanh.pop %v594
  %597 = vrot.lane.b32.xlu0 %v595, 64
  %v598 = vpop.permute.xlu0 %597
  %v600 = vmul.f32 %v579, %v598
  %v601 = vld [vmem:[%s0 + $0x10] sm:$0xc]
  %v602 = vld [vmem:[%s0 + $0x18] sm:$0xc]
  %v604 = vsel %vm29, %v600, 0
  %606 = vmatprep.subr.mxu0 %v14
  %607 = vmatpush1.msra.mxu0 %v13
  %608 = vmatprep.subr.mxu0 %v16
  %609 = vmatpush1.msra.mxu0 %v15
  %610 = vmatprep.subr.mxu0 %v18
  %611 = vmatpush1.msra.mxu0 %v17
  %612 = vmatprep.subr.mxu0 %v20
  %613 = vmatpush1.msra.mxu0 %v19
  %614 = vmatprep.subr.mxu0 %v22
  %615 = vmatpush1.msra.mxu0 %v21
  %616 = vmatprep.subr.mxu0 %v24
  %617 = vmatpush1.msra.mxu0 %v23
  %618 = vmatprep.subr.mxu0 %v26
  %619 = vmatpush1.msra.mxu0 %v25
  %620 = vmatprep.subr.mxu0 %v28
  %621 = vmatpush1.msra.mxu0 %v27
  %622 = vmatprep.subr.mxu0 0.0
  %623 = vmatpush1.msra.mxu0 0.0
  %624 = vmatprep.subr.mxu0 0.0
  %625 = vmatpush1.msra.mxu0 0.0
  %626 = vmatprep.subr.mxu0 0.0
  %627 = vmatpush1.msra.mxu0 0.0
  %628 = vmatprep.subr.mxu0 0.0
  %629 = vmatpush1.msra.mxu0 0.0
  %630 = vmatprep.subr.mxu0 0.0
  %631 = vmatpush1.msra.mxu0 0.0
  %632 = vmatprep.subr.mxu0 0.0
  %633 = vmatpush1.msra.mxu0 0.0
  %634 = vmatprep.subr.mxu0 0.0
  %635 = vmatpush1.msra.mxu0 0.0
  %636 = vmatprep.subr.mxu0 0.0
  %637 = vmatpush1.msra.mxu0 0.0
  %638 = vmatprep.subr.mxu0 0.0
  %639 = vmatpush1.msra.mxu0 0.0
  %640 = vmatprep.subr.mxu0 0.0
  %641 = vmatpush1.msra.mxu0 0.0
  %642 = vmatprep.subr.mxu0 0.0
  %643 = vmatpush1.msra.mxu0 0.0
  %644 = vmatprep.subr.mxu0 0.0
  %645 = vmatpush1.msra.mxu0 0.0
  %646 = vmatprep.subr.mxu0 0.0
  %647 = vmatpush1.msra.mxu0 0.0
  %648 = vmatprep.subr.mxu0 0.0
  %649 = vmatpush1.msra.mxu0 0.0
  %650 = vmatprep.subr.mxu0 0.0
  %651 = vmatpush1.msra.mxu0 0.0
  %652 = vmatprep.subr.mxu0 0.0
  %653 = vmatpush1.msra.mxu0 0.0
  %654 = vmatprep.subr.mxu0 0.0
  %655 = vmatpush1.msra.mxu0 0.0
  %656 = vmatprep.subr.mxu0 0.0
  %657 = vmatpush1.msra.mxu0 0.0
  %658 = vmatprep.subr.mxu0 0.0
  %659 = vmatpush1.msra.mxu0 0.0
  %660 = vmatprep.subr.mxu0 0.0
  %661 = vmatpush1.msra.mxu0 0.0
  %662 = vmatprep.subr.mxu0 0.0
  %663 = vmatpush1.msra.mxu0 0.0
  %664 = vmatprep.subr.mxu0 0.0
  %665 = vmatpush1.msra.mxu0 0.0
  %666 = vmatprep.subr.mxu0 0.0
  %667 = vmatpush1.msra.mxu0 0.0
  %668 = vmatprep.subr.mxu0 0.0
  %669 = vmatpush1.msra.mxu0 0.0
  %670 = vmatprep.mubr.f32.mxu0 0.0
  %671 = vmatmul.mubr.f32.gmra.mrb[0].mxu0 %v604
  %v672 = vpop.f32.mrb[0].mxu0
  %v673 = vadd.f32 0.0, %v672
  %v674 = vpop.f32.mrb[0].mxu0
  %v675 = vadd.f32 0.0, %v674
  %676 = vdwg.mxu0
  %v679 = vrot.slane %v673, 6
  %v680 = vrot.slane %v675, 6
  %v683 = vadd.f32 %v601, %v679
  %v684 = vadd.f32 %v602, %v680
  %v685 = vxor.u32 %v683, 2147483648
  %v686 = vxor.u32 %v684, 2147483648
  %v687 = vmul.f32 %v685, 1.442695
  %v688 = vpow.pop %v687
  %v689 = vmul.f32 %v686, 1.442695
  %v690 = vpow.pop %v689
  %v691 = vadd.f32 %v688, 1.0
  %v692 = vadd.f32 %v690, 1.0
  %v693 = vrcp.pop %v691
  %v694 = vmul.f32 1.0, %v693
  %v695 = vrcp.pop %v692
  %v696 = vmul.f32 1.0, %v695
  %v697 = vtanh.pop %v684
  %v699 = vrot.slane %v594, 6
  %v701 = vmul.f32 %v694, %v699
  %703 = vrot.lane.b32.xlu0 %v697, 64
  %v704 = vpop.permute.xlu0 %703
  %v706 = vmul.f32 %v694, %v704
  %708 = vrot.lane.b32.xlu0 %v706, 64
  %v709 = vpop.permute.xlu0 %708
  %v711 = vadd.f32 %v701, %v709
  %v712 = vtanh.pop %v711
  %714 = vrot.lane.b32.xlu0 %v712, 64
  %v715 = vpop.permute.xlu0 %714
  %v717 = vmul.f32 %v696, %v715
  %v718 = vld [vmem:[%s0 + $0x10] sm:$0x30]
  %v719 = vld [vmem:[%s0 + $0x18] sm:$0x30]
  %v721 = vrot.slane %v717, 2
  %v722 = vsel %vm29, %v721, 0
  %724 = vmatprep.subr.mxu0 %v14
  %725 = vmatpush1.msra.mxu0 %v13
  %726 = vmatprep.subr.mxu0 %v16
  %727 = vmatpush1.msra.mxu0 %v15
  %728 = vmatprep.subr.mxu0 %v18
  %729 = vmatpush1.msra.mxu0 %v17
  %730 = vmatprep.subr.mxu0 %v20
  %731 = vmatpush1.msra.mxu0 %v19
  %732 = vmatprep.subr.mxu0 %v22
  %733 = vmatpush1.msra.mxu0 %v21
  %734 = vmatprep.subr.mxu0 %v24
  %735 = vmatpush1.msra.mxu0 %v23
  %736 = vmatprep.subr.mxu0 %v26
  %737 = vmatpush1.msra.mxu0 %v25
  %738 = vmatprep.subr.mxu0 %v28
  %739 = vmatpush1.msra.mxu0 %v27
  %740 = vmatprep.subr.mxu0 0.0
  %741 = vmatpush1.msra.mxu0 0.0
  %742 = vmatprep.subr.mxu0 0.0
  %743 = vmatpush1.msra.mxu0 0.0
  %744 = vmatprep.subr.mxu0 0.0
  %745 = vmatpush1.msra.mxu0 0.0
  %746 = vmatprep.subr.mxu0 0.0
  %747 = vmatpush1.msra.mxu0 0.0
  %748 = vmatprep.subr.mxu0 0.0
  %749 = vmatpush1.msra.mxu0 0.0
  %750 = vmatprep.subr.mxu0 0.0
  %751 = vmatpush1.msra.mxu0 0.0
  %752 = vmatprep.subr.mxu0 0.0
  %753 = vmatpush1.msra.mxu0 0.0
  %754 = vmatprep.subr.mxu0 0.0
  %755 = vmatpush1.msra.mxu0 0.0
  %756 = vmatprep.subr.mxu0 0.0
  %757 = vmatpush1.msra.mxu0 0.0
  %758 = vmatprep.subr.mxu0 0.0
  %759 = vmatpush1.msra.mxu0 0.0
  %760 = vmatprep.subr.mxu0 0.0
  %761 = vmatpush1.msra.mxu0 0.0
  %762 = vmatprep.subr.mxu0 0.0
  %763 = vmatpush1.msra.mxu0 0.0
  %764 = vmatprep.subr.mxu0 0.0
  %765 = vmatpush1.msra.mxu0 0.0
  %766 = vmatprep.subr.mxu0 0.0
  %767 = vmatpush1.msra.mxu0 0.0
  %768 = vmatprep.subr.mxu0 0.0
  %769 = vmatpush1.msra.mxu0 0.0
  %770 = vmatprep.subr.mxu0 0.0
  %771 = vmatpush1.msra.mxu0 0.0
  %772 = vmatprep.subr.mxu0 0.0
  %773 = vmatpush1.msra.mxu0 0.0
  %774 = vmatprep.subr.mxu0 0.0
  %775 = vmatpush1.msra.mxu0 0.0
  %776 = vmatprep.subr.mxu0 0.0
  %777 = vmatpush1.msra.mxu0 0.0
  %778 = vmatprep.subr.mxu0 0.0
  %779 = vmatpush1.msra.mxu0 0.0
  %780 = vmatprep.subr.mxu0 0.0
  %781 = vmatpush1.msra.mxu0 0.0
  %782 = vmatprep.subr.mxu0 0.0
  %783 = vmatpush1.msra.mxu0 0.0
  %784 = vmatprep.subr.mxu0 0.0
  %785 = vmatpush1.msra.mxu0 0.0
  %786 = vmatprep.subr.mxu0 0.0
  %787 = vmatpush1.msra.mxu0 0.0
  %788 = vmatprep.mubr.f32.mxu0 0.0
  %789 = vmatmul.mubr.f32.gmra.mrb[0].mxu0 %v722
  %v790 = vpop.f32.mrb[0].mxu0
  %v791 = vadd.f32 0.0, %v790
  %v792 = vpop.f32.mrb[0].mxu0
  %v793 = vadd.f32 0.0, %v792
  %794 = vdwg.mxu0
  %v797 = vrot.slane %v791, 4
  %v798 = vrot.slane %v793, 4
  %v801 = vadd.f32 %v718, %v797
  %v802 = vadd.f32 %v719, %v798
  %v803 = vxor.u32 %v801, 2147483648
  %v804 = vxor.u32 %v802, 2147483648
  %v805 = vmul.f32 %v803, 1.442695
  %v806 = vpow.pop %v805
  %v807 = vmul.f32 %v804, 1.442695
  %v808 = vpow.pop %v807
  %v809 = vadd.f32 %v806, 1.0
  %v810 = vadd.f32 %v808, 1.0
  %v811 = vrcp.pop %v809
  %v812 = vmul.f32 1.0, %v811
  %v813 = vrcp.pop %v810
  %v814 = vmul.f32 1.0, %v813
  %v815 = vtanh.pop %v802
  %v817 = vrot.slane %v711, 6
  %v819 = vmul.f32 %v812, %v817
  %821 = vrot.lane.b32.xlu0 %v815, 64
  %v822 = vpop.permute.xlu0 %821
  %v824 = vmul.f32 %v812, %v822
  %826 = vrot.lane.b32.xlu0 %v824, 64
  %v827 = vpop.permute.xlu0 %826
  %v829 = vadd.f32 %v819, %v827
  %v830 = vtanh.pop %v829
  %832 = vrot.lane.b32.xlu0 %v830, 64
  %v833 = vpop.permute.xlu0 %832
  %v835 = vmul.f32 %v814, %v833
  %v836 = vld [vmem:[%s0 + $0x10] sm:$0xc0]
  %v837 = vld [vmem:[%s0 + $0x18] sm:$0xc0]
  %v839 = vrot.slane %v835, 4
  %v840 = vsel %vm29, %v839, 0
  %842 = vmatprep.subr.mxu0 %v14
  %843 = vmatpush1.msra.mxu0 %v13
  %844 = vmatprep.subr.mxu0 %v16
  %845 = vmatpush1.msra.mxu0 %v15
  %846 = vmatprep.subr.mxu0 %v18
  %847 = vmatpush1.msra.mxu0 %v17
  %848 = vmatprep.subr.mxu0 %v20
  %849 = vmatpush1.msra.mxu0 %v19
  %850 = vmatprep.subr.mxu0 %v22
  %851 = vmatpush1.msra.mxu0 %v21
  %852 = vmatprep.subr.mxu0 %v24
  %853 = vmatpush1.msra.mxu0 %v23
  %854 = vmatprep.subr.mxu0 %v26
  %855 = vmatpush1.msra.mxu0 %v25
  %856 = vmatprep.subr.mxu0 %v28
  %857 = vmatpush1.msra.mxu0 %v27
  %858 = vmatprep.subr.mxu0 0.0
  %859 = vmatpush1.msra.mxu0 0.0
  %860 = vmatprep.subr.mxu0 0.0
  %861 = vmatpush1.msra.mxu0 0.0
  %862 = vmatprep.subr.mxu0 0.0
  %863 = vmatpush1.msra.mxu0 0.0
  %864 = vmatprep.subr.mxu0 0.0
  %865 = vmatpush1.msra.mxu0 0.0
  %866 = vmatprep.subr.mxu0 0.0
  %867 = vmatpush1.msra.mxu0 0.0
  %868 = vmatprep.subr.mxu0 0.0
  %869 = vmatpush1.msra.mxu0 0.0
  %870 = vmatprep.subr.mxu0 0.0
  %871 = vmatpush1.msra.mxu0 0.0
  %872 = vmatprep.subr.mxu0 0.0
  %873 = vmatpush1.msra.mxu0 0.0
  %874 = vmatprep.subr.mxu0 0.0
  %875 = vmatpush1.msra.mxu0 0.0
  %876 = vmatprep.subr.mxu0 0.0
  %877 = vmatpush1.msra.mxu0 0.0
  %878 = vmatprep.subr.mxu0 0.0
  %879 = vmatpush1.msra.mxu0 0.0
  %880 = vmatprep.subr.mxu0 0.0
  %881 = vmatpush1.msra.mxu0 0.0
  %882 = vmatprep.subr.mxu0 0.0
  %883 = vmatpush1.msra.mxu0 0.0
  %884 = vmatprep.subr.mxu0 0.0
  %885 = vmatpush1.msra.mxu0 0.0
  %886 = vmatprep.subr.mxu0 0.0
  %887 = vmatpush1.msra.mxu0 0.0
  %888 = vmatprep.subr.mxu0 0.0
  %889 = vmatpush1.msra.mxu0 0.0
  %890 = vmatprep.subr.mxu0 0.0
  %891 = vmatpush1.msra.mxu0 0.0
  %892 = vmatprep.subr.mxu0 0.0
  %893 = vmatpush1.msra.mxu0 0.0
  %894 = vmatprep.subr.mxu0 0.0
  %895 = vmatpush1.msra.mxu0 0.0
  %896 = vmatprep.subr.mxu0 0.0
  %897 = vmatpush1.msra.mxu0 0.0
  %898 = vmatprep.subr.mxu0 0.0
  %899 = vmatpush1.msra.mxu0 0.0
  %900 = vmatprep.subr.mxu0 0.0
  %901 = vmatpush1.msra.mxu0 0.0
  %902 = vmatprep.subr.mxu0 0.0
  %903 = vmatpush1.msra.mxu0 0.0
  %904 = vmatprep.subr.mxu0 0.0
  %905 = vmatpush1.msra.mxu0 0.0
  %906 = vmatprep.mubr.f32.mxu0 0.0
  %907 = vmatmul.mubr.f32.gmra.mrb[0].mxu0 %v840
  %v908 = vpop.f32.mrb[0].mxu0
  %v909 = vadd.f32 0.0, %v908
  %v910 = vpop.f32.mrb[0].mxu0
  %v911 = vadd.f32 0.0, %v910
  %912 = vdwg.mxu0
  %v915 = vrot.slane %v909, 2
  %v916 = vrot.slane %v911, 2
  %v919 = vadd.f32 %v836, %v915
  %v920 = vadd.f32 %v837, %v916
  %v921 = vxor.u32 %v919, 2147483648
  %v922 = vxor.u32 %v920, 2147483648
  %v923 = vmul.f32 %v921, 1.442695
  %v924 = vpow.pop %v923
  %v925 = vmul.f32 %v922, 1.442695
  %v926 = vpow.pop %v925
  %v927 = vadd.f32 %v924, 1.0
  %v928 = vadd.f32 %v926, 1.0
  %v929 = vrcp.pop %v927
  %v930 = vmul.f32 1.0, %v929
  %v931 = vrcp.pop %v928
  %v932 = vmul.f32 1.0, %v931
  %v933 = vtanh.pop %v920
  %v935 = vrot.slane %v829, 6
  %v937 = vmul.f32 %v930, %v935
  %939 = vrot.lane.b32.xlu0 %v933, 64
  %v940 = vpop.permute.xlu0 %939
  %v942 = vmul.f32 %v930, %v940
  %944 = vrot.lane.b32.xlu0 %v942, 64
  %v945 = vpop.permute.xlu0 %944
  %v947 = vadd.f32 %v937, %v945
  %v948 = vtanh.pop %v947
  %950 = vrot.lane.b32.xlu0 %v948, 64
  %v951 = vpop.permute.xlu0 %950
  %v953 = vmul.f32 %v932, %v951
  %v954 = vlaneseq
  %v955 = vand.u32 %v954, 127
  %vm956 = vcmp.lt.s32.totalorder %v955, 32
  %v958 = vrot.slane %v953, 6
  %v960 = vsel %vm956, %v135, %v958
  %v961 = vrot.slane %v835, 2
  %v963 = vsel %vm956, %v252, %v961
  %v964 = vrot.slane %v717, 6
  %v966 = vsel %vm956, %v370, %v964
  %v967 = vrot.slane %v600, 2
  %v969 = vsel %vm956, %v488, %v967
  %v971 = vsel %vm956, %v600, %v492
  %v972 = vrot.slane %v370, 2
  %v974 = vsel %vm956, %v717, %v972
  %v975 = vrot.slane %v252, 6
  %v977 = vsel %vm956, %v835, %v975
  %v978 = vrot.slane %v135, 2
  %v980 = vsel %vm956, %v953, %v978
  %vm981 = vcmask 1041408
  %v982 = vsel %vm981, %v960, %v963
  %vm983 = vcmask 1043456
  %v984 = vsel %vm983, %v982, %v966
  %vm985 = vcmask 1045504
  %v986 = vsel %vm985, %v984, %v969
  %v987 = vsel %vm981, %v971, %v974
  %v988 = vsel %vm983, %v987, %v977
  %v989 = vsel %vm985, %v988, %v980
  %991 = vrot.lane.b32.xlu0 %v989, 64
  %v992 = vpop.permute.xlu0 %991
  %v994 = vsel %vm29, %v986, %v992
  %v995 = vsel %vm29, %v953, %v947
  %v997 = vrot.slane %v995, 6
  %999 = vst [vmem:[%s2] sm:$0xff] %v994
  %1000 = vst [vmem:[%s2 + $0x8] sm:$0x3] %v997
  // Predicated region
  $region10: #{encoder_rnn_forward.1} parent=0 // pred_check
    _
  $region11: #{encoder_rnn_forward.1} parent=0 // pred_check_branch
    %1002 = sbr.rel (0) target = $region13
  $region12: #{encoder_rnn_forward.1} parent=0 // pred_region
    _
  $region13: #{encoder_rnn_forward.1} parent=0 // pred_fallthru
    _
  // Predicated region
  $region14: #{encoder_rnn_forward.1} parent=0 // pred_check
    _
  $region15: #{encoder_rnn_forward.1} parent=0 // pred_check_branch
    %1004 = sbr.rel (0) target = $region17
  $region16: #{encoder_rnn_forward.1} parent=0 // pred_region
    _
  $region17: #{encoder_rnn_forward.1} parent=0 // pred_fallthru
    _

</llo_original>
